<compile_context>
chip_gen: v6e
topology: v6e:2x2x1
jax: 0.10.0
libtpu: 0.0.40
codegen_flags: <defaults>
</compile_context>

<pallas_src>
import functools

import jax
import jax.numpy as jnp
from jax.experimental import pallas as pl
from jax.experimental.pallas import tpu as pltpu  # noqa: F401  (TPU backend assumed)

# ----------------------------------------------------------------------------
# Model hyper-parameters (small synthetic stand-in for BLIP-2)
# ----------------------------------------------------------------------------
B = 2                       # batch
IMG_C, IMG_H, IMG_W = 3, 16, 16
PATCH = 8
N_PATCH = (IMG_H // PATCH) * (IMG_W // PATCH)    # 4
SV = N_PATCH + 1                                 # vision seq: cls + patches = 5
D_VIS = 32                  # vision hidden
N_HEAD_VIS = 2
N_QUERY = 4                 # Q-Former learned queries
D_QF = 32                   # Q-Former hidden
N_HEAD_QF = 2
D_LM = 32                   # language-model hidden
N_HEAD_LM = 2
SEQ_T = 8                   # text sequence length
S_LM = N_QUERY + SEQ_T      # 12
VOCAB = 128                 # padded to a full 128-lane vreg -> lane-dense logits store
LORA_R = 16
LORA_ALPHA = 32
LORA_SCALE = LORA_ALPHA / LORA_R                 # = 2.0
# LoRA dropout (p=0.05) is a training-time op; forward here is eval-mode -> identity.

NEG_INF = -1e9
FEAT_DIM = IMG_C * PATCH * PATCH                 # 192


def _full_spec(shape):
    n = len(shape)
    return pl.BlockSpec(shape, lambda *a, _n=n: (0,) * _n)


# ----------------------------------------------------------------------------
# One-shot setup kernel: fold LoRA into the base projection (eval mode)
# ----------------------------------------------------------------------------
def _fold_lora_kernel(w_ref, a_ref, b_ref, o_ref, *, scale):
    o_ref[...] = w_ref[...] + scale * jnp.dot(
        a_ref[...], b_ref[...], preferred_element_type=jnp.float32)


def fold_lora(w, lora_a, lora_b, scale=LORA_SCALE):
    """W_eff = W + scale * A @ B  (exact in eval mode; dropout is identity)."""
    K, N = w.shape
    r = lora_a.shape[1]
    return pl.pallas_call(
        functools.partial(_fold_lora_kernel, scale=scale),
        out_shape=jax.ShapeDtypeStruct((K, N), jnp.float32),
        in_specs=[_full_spec((K, N)), _full_spec((K, r)), _full_spec((r, N))],
        out_specs=_full_spec((K, N)),
    )(w, lora_a, lora_b)


# ----------------------------------------------------------------------------
# The fused forward kernel (whole model in one pallas_call, everything in VMEM)
# ----------------------------------------------------------------------------
def _fused_kernel(*refs, names, n_in):
    W = {name: refs[i] for i, name in enumerate(names)}
    logits_ref = refs[n_in]
    loss_ref = refs[n_in + 1]

    def rd(name):
        return W[name][...]

    def dot(a, b):
        return jnp.dot(a, b, preferred_element_type=jnp.float32)

    def ln(x, prefix):
        mu = jnp.mean(x, axis=-1, keepdims=True)
        xc = x - mu
        var = jnp.mean(xc * xc, axis=-1, keepdims=True)
        return xc * jax.lax.rsqrt(var + 1e-5) * rd(prefix + "_g") + rd(prefix + "_b")

    def heads_attn(q, k, vv, wo, bo, mask_add, n_heads):
        # q: [Nq, D], k/vv: [Nk, D]; mask_add: [Nq, Nk] additive (shared by all heads).
        D = q.shape[1]
        Dh = D // n_heads
        scale = 1.0 / (Dh ** 0.5)
        out = None
        for h in range(n_heads):                      # unrolled: H is tiny & static
            sl = slice(h * Dh, (h + 1) * Dh)
            qh, kh, vh = q[:, sl], k[:, sl], vv[:, sl]
            s = jax.lax.dot_general(                  # q @ k^T without materializing k^T
                qh, kh, (((1,), (1,)), ((), ())),
                preferred_element_type=jnp.float32) * scale
            s = s + mask_add
            mx = jnp.max(s, axis=-1, keepdims=True)
            p = jnp.exp(s - mx)
            denom = jnp.sum(p, axis=-1, keepdims=True)
            oh = dot(p, vh) * pl.reciprocal(denom, approx=True)   # divide -> EUP slot
            contrib = dot(oh, wo[sl, :])              # accumulate head output proj
            out = contrib if out is None else out + contrib
        return out + bo

    def self_attn(x, prefix, mask_add, n_heads):
        D = x.shape[1]
        qkv = dot(x, rd(prefix + "_wqkv")) + rd(prefix + "_bqkv")   # fused QKV matmul
        q, k, vv = qkv[:, 0:D], qkv[:, D:2 * D], qkv[:, 2 * D:3 * D]
        return heads_attn(q, k, vv, rd(prefix + "_wo"), rd(prefix + "_bo"),
                          mask_add, n_heads)

    def cross_attn(xq, xkv, prefix, mask_add, n_heads):
        D = xq.shape[1]
        q = dot(xq, rd(prefix + "_wq")) + rd(prefix + "_bq")
        kv = dot(xkv, rd(prefix + "_wkv")) + rd(prefix + "_bkv")    # fused KV matmul
        k, vv = kv[:, 0:D], kv[:, D:2 * D]
        return heads_attn(q, k, vv, rd(prefix + "_wo"), rd(prefix + "_bo"),
                          mask_add, n_heads)

    def mlp(x, prefix):
        # TODO(synk): HF BLIP-2 ViT/Q-Former use exact GELU and OPT uses ReLU;
        # tanh-GELU is kept as the synthetic stand-in activation.
        h = dot(x, rd(prefix + "_w1")) + rd(prefix + "_b1")
        h = jax.nn.gelu(h, approximate=True)
        return dot(h, rd(prefix + "_w2")) + rd(prefix + "_b2")

    # ---------------- vision encoder (ViT-style, pre-LN block) ----------------
    # patches_ext carries a trailing cls-indicator column; the extended patch
    # weight has a matching cls row, so the cls token is produced by the same matmul.
    vis = dot(rd("patches_ext"), rd("vis_patch_w")) + rd("vis_patch_b") + rd("vis_pos2d")
    h = ln(vis, "vis_ln1")
    vis = vis + self_attn(h, "vis", rd("mask_vis"), N_HEAD_VIS)
    h = ln(vis, "vis_ln2")
    vis = vis + mlp(h, "vis_mlp")
    vis = ln(vis, "vis_lnf")                         # image embeds [B*SV, D_VIS]

    # ---------------- Q-Former (self-attn + cross-attn to image + MLP) --------
    q = rd("qf_query2d")                             # learned queries [B*NQ, D_QF]
    h = ln(q, "qf_ln1")
    q = q + self_attn(h, "qf_self", rd("mask_qq"), N_HEAD_QF)
    h = ln(q, "qf_ln2")
    q = q + cross_attn(h, vis, "qf_cross", rd("mask_qv"), N_HEAD_QF)
    h = ln(q, "qf_ln3")
    q = q + mlp(h, "qf_mlp")                         # [B*NQ, D_QF]

    # ---------------- language model (LoRA folded into q/v projections) -------
    q_lm = dot(q, rd("lang_proj_w")) + rd("lang_proj_b")          # [B*NQ, D_LM]
    # Scatter the projected queries into the full LM sequence via a constant
    # selection matrix (MXU-friendly "concat"); text token embeddings + positions
    # arrive pre-scattered in tok_pos2d.
    x = dot(rd("qsel"), q_lm) + rd("tok_pos2d")                    # [B*S_LM, D_LM]
    h = ln(x, "lm_ln1")
    x = x + self_attn(h, "lm", rd("mask_lm"), N_HEAD_LM)           # LoRA-folded q/v
    h = ln(x, "lm_ln2")
    x = x + mlp(h, "lm_mlp")
    x = ln(x, "lm_lnf")

    logits = dot(x, rd("lm_head_w")) + rd("lm_head_b")             # [B*S_LM, VOCAB]
    logits_ref[...] = logits                                       # lane-dense store

    # ---------------- fused shifted cross-entropy --------------------------------
    # loss_tgt holds the (validity-masked) one-hot targets already scattered into the
    # same row space as `logits`; rows without a shifted text target are all-zero.
    mx = jnp.max(logits, axis=-1, keepdims=True)
    z = logits - mx
    lse = jnp.log(jnp.sum(jnp.exp(z), axis=-1, keepdims=True))
    logp = z - lse
    nll = -(logp * rd("loss_tgt"))
    s1 = jnp.sum(nll, axis=1, keepdims=True)                       # [B*S_LM, 1]
    s0 = jnp.sum(s1, axis=0, keepdims=True)                        # [1, 1]
    loss_ref[...] = s0 * rd("loss_inv_cnt")


def _fused_call(kernel_weights, data):
    inputs = dict(kernel_weights)
    inputs.update(data)
    names = tuple(sorted(inputs.keys()))
    arrays = [inputs[n] for n in names]
    out_shape = (jax.ShapeDtypeStruct((B * S_LM, VOCAB), jnp.float32),
                 jax.ShapeDtypeStruct((1, 1), jnp.float32))
    return pl.pallas_call(
        functools.partial(_fused_kernel, names=names, n_in=len(arrays)),
        out_shape=out_shape,
        in_specs=[_full_spec(a.shape) for a in arrays],
        out_specs=(_full_spec((B * S_LM, VOCAB)), _full_spec((1, 1))),
    )(*arrays)


# ----------------------------------------------------------------------------
# Parameter initialization (deterministic, synthetic)
# ----------------------------------------------------------------------------
def _dense(key, din, dout, scale=None):
    kw, kb = jax.random.split(key)
    s = scale if scale is not None else 1.0 / (din ** 0.5)
    w = jax.random.normal(kw, (din, dout), jnp.float32) * s
    b = jax.random.normal(kb, (dout,), jnp.float32) * 0.01
    return w, b


def _attn_params(key, d_q, d_kv, lora=False):
    ks = jax.random.split(key, 8)
    p = {}
    p["wq"], p["bq"] = _dense(ks[0], d_q, d_q)
    p["wk"], p["bk"] = _dense(ks[1], d_kv, d_q)
    p["wv"], p["bv"] = _dense(ks[2], d_kv, d_q)
    p["wo"], p["bo"] = _dense(ks[3], d_q, d_q)
    if lora:
        # NOTE: PEFT inits lora_B to zero; use small nonzero values here so the
        # LoRA fold is numerically exercised.
        p["Aq"] = jax.random.normal(ks[4], (d_q, LORA_R), jnp.float32) * (1.0 / (d_q ** 0.5))
        p["Bq"] = jax.random.normal(ks[5], (LORA_R, d_q), jnp.float32) * 0.02
        p["Av"] = jax.random.normal(ks[6], (d_kv, LORA_R), jnp.float32) * (1.0 / (d_kv ** 0.5))
        p["Bv"] = jax.random.normal(ks[7], (LORA_R, d_q), jnp.float32) * 0.02
    return p


def _mlp_params(key, d, d_ff):
    k1, k2 = jax.random.split(key)
    p = {}
    p["w1"], p["b1"] = _dense(k1, d, d_ff)
    p["w2"], p["b2"] = _dense(k2, d_ff, d)
    return p


def _ln_params(_key, d):
    return {"g": jnp.ones((d,), jnp.float32), "b": jnp.zeros((d,), jnp.float32)}


def init_params(key):
    ks = jax.random.split(key, 24)
    P = {}
    # Vision encoder (ViT-style)
    P["patch_w"], P["patch_b"] = _dense(ks[0], FEAT_DIM, D_VIS)
    P["cls_tok"] = jax.random.normal(ks[1], (1, 1, D_VIS), jnp.float32) * 0.02
    P["vis_pos"] = jax.random.normal(ks[2], (1, SV, D_VIS), jnp.float32) * 0.02
    P["vis_ln1"] = _ln_params(ks[3], D_VIS)
    P["vis_attn"] = _attn_params(ks[4], D_VIS, D_VIS)
    P["vis_ln2"] = _ln_params(ks[5], D_VIS)
    P["vis_mlp"] = _mlp_params(ks[6], D_VIS, 4 * D_VIS)
    P["vis_lnf"] = _ln_params(ks[7], D_VIS)
    # Q-Former
    P["query_tokens"] = jax.random.normal(ks[8], (1, N_QUERY, D_QF), jnp.float32) * 0.02
    P["qf_ln1"] = _ln_params(ks[9], D_QF)
    P["qf_self"] = _attn_params(ks[10], D_QF, D_QF)
    P["qf_ln2"] = _ln_params(ks[11], D_QF)
    P["qf_cross"] = _attn_params(ks[12], D_QF, D_VIS)
    P["qf_ln3"] = _ln_params(ks[13], D_QF)
    P["qf_mlp"] = _mlp_params(ks[14], D_QF, 4 * D_QF)
    # language projection
    P["lang_proj_w"], P["lang_proj_b"] = _dense(ks[15], D_QF, D_LM)
    # Language model (OPT-style decoder layer with LoRA on q_proj / v_proj)
    P["tok_emb"] = jax.random.normal(ks[16], (VOCAB, D_LM), jnp.float32) * 0.02
    P["lm_pos"] = jax.random.normal(ks[17], (1, S_LM, D_LM), jnp.float32) * 0.02
    P["lm_ln1"] = _ln_params(ks[18], D_LM)
    P["lm_attn"] = _attn_params(ks[19], D_LM, D_LM, lora=True)
    P["lm_ln2"] = _ln_params(ks[20], D_LM)
    P["lm_mlp"] = _mlp_params(ks[21], D_LM, 4 * D_LM)
    P["lm_lnf"] = _ln_params(ks[22], D_LM)
    P["lm_head_w"], _ = _dense(ks[23], D_LM, VOCAB)
    P["lm_head_b"] = jnp.zeros((VOCAB,), jnp.float32)
    return P


# ----------------------------------------------------------------------------
# One-time eval-mode weight preparation (LoRA fold, QKV fusion, constant masks)
# ----------------------------------------------------------------------------
def prepare_inference_weights(P):
    def row(x):
        return x.reshape(1, -1)

    Wk = {}

    # Vision patch embedding with the cls token folded in as an extra input column:
    # cls rows of the input carry a 1 in the last column; the matching weight row is
    # (cls_tok - patch_b) so cls positions come out exactly as cls_tok (+pos later).
    cls_row = P["cls_tok"].reshape(1, D_VIS) - row(P["patch_b"])
    Wk["vis_patch_w"] = jnp.concatenate([P["patch_w"], cls_row], axis=0)   # [193, D_VIS]
    Wk["vis_patch_b"] = row(P["patch_b"])
    Wk["vis_pos2d"] = jnp.tile(P["vis_pos"][0], (B, 1))                    # [B*SV, D_VIS]

    def add_ln(name, lp):
        Wk[name + "_g"] = row(lp["g"])
        Wk[name + "_b"] = row(lp["b"])

    def add_self_attn(name, ap, wq=None, wv=None):
        wq = ap["wq"] if wq is None else wq
        wv = ap["wv"] if wv is None else wv
        Wk[name + "_wqkv"] = jnp.concatenate([wq, ap["wk"], wv], axis=1)
        Wk[name + "_bqkv"] = jnp.concatenate([ap["bq"], ap["bk"], ap["bv"]]).reshape(1, -1)
        Wk[name + "_wo"] = ap["wo"]
        Wk[name + "_bo"] = row(ap["bo"])

    def add_mlp(name, mp):
        Wk[name + "_w1"] = mp["w1"]
        Wk[name + "_b1"] = row(mp["b1"])
        Wk[name + "_w2"] = mp["w2"]
        Wk[name + "_b2"] = row(mp["b2"])

    # vision block
    add_ln("vis_ln1", P["vis_ln1"])
    add_self_attn("vis", P["vis_attn"])
    add_ln("vis_ln2", P["vis_ln2"])
    add_mlp("vis_mlp", P["vis_mlp"])
    add_ln("vis_lnf", P["vis_lnf"])

    # Q-Former
    Wk["qf_query2d"] = jnp.tile(P["query_tokens"][0], (B, 1))              # [B*NQ, D_QF]
    add_ln("qf_ln1", P["qf_ln1"])
    add_self_attn("qf_self", P["qf_self"])
    add_ln("qf_ln2", P["qf_ln2"])
    cp = P["qf_cross"]
    Wk["qf_cross_wq"] = cp["wq"]
    Wk["qf_cross_bq"] = row(cp["bq"])
    Wk["qf_cross_wkv"] = jnp.concatenate([cp["wk"], cp["wv"]], axis=1)
    Wk["qf_cross_bkv"] = jnp.concatenate([cp["bk"], cp["bv"]]).reshape(1, -1)
    Wk["qf_cross_wo"] = cp["wo"]
    Wk["qf_cross_bo"] = row(cp["bo"])
    add_ln("qf_ln3", P["qf_ln3"])
    add_mlp("qf_mlp", P["qf_mlp"])

    # language projection
    Wk["lang_proj_w"] = P["lang_proj_w"]
    Wk["lang_proj_b"] = row(P["lang_proj_b"])

    # LM block: fold LoRA into q_proj / v_proj (one-shot Pallas kernel), then fuse QKV.
    la = P["lm_attn"]
    wq_eff = fold_lora(la["wq"], la["Aq"], la["Bq"])
    wv_eff = fold_lora(la["wv"], la["Av"], la["Bv"])
    add_ln("lm_ln1", P["lm_ln1"])
    add_self_attn("lm", la, wq=wq_eff, wv=wv_eff)
    add_ln("lm_ln2", P["lm_ln2"])
    add_mlp("lm_mlp", P["lm_mlp"])
    add_ln("lm_lnf", P["lm_lnf"])
    Wk["lm_head_w"] = P["lm_head_w"]
    Wk["lm_head_b"] = row(P["lm_head_b"])

    # Constant structural helpers (batch folded into rows -> block-diagonal masks keep
    # batches from attending to each other; qsel scatters queries into the LM sequence).
    def block_mask(sq, sk):
        rq = jnp.arange(B * sq) // sq
        rk = jnp.arange(B * sk) // sk
        return jnp.where(rq[:, None] == rk[None, :], 0.0, NEG_INF).astype(jnp.float32)

    Wk["mask_vis"] = block_mask(SV, SV)
    Wk["mask_qq"] = block_mask(N_QUERY, N_QUERY)
    Wk["mask_qv"] = block_mask(N_QUERY, SV)

    r = jnp.arange(B * S_LM)
    c = jnp.arange(B * N_QUERY)
    qsel = ((r[:, None] // S_LM == c[None, :] // N_QUERY)
            & (r[:, None] % S_LM == c[None, :] % N_QUERY)).astype(jnp.float32)
    Wk["qsel"] = qsel                                                       # [B*S_LM, B*NQ]

    aux = {"tok_emb": P["tok_emb"], "lm_pos": P["lm_pos"]}
    return {"kernel": Wk, "aux": aux}


# ----------------------------------------------------------------------------
# Forward pass (thin JAX glue around the single fused Pallas kernel)
# ----------------------------------------------------------------------------
def _extract_patches(pixel_values):
    """NCHW -> [B, num_patches, C*ph*pw] (Conv2d-compatible flattening)."""
    Bb, C, H, W = pixel_values.shape
    x = pixel_values.reshape(Bb, C, H // PATCH, PATCH, W // PATCH, PATCH)
    x = x.transpose(0, 2, 4, 1, 3, 5)                  # [B, Hp, Wp, C, ph, pw]
    return x.reshape(Bb, (H // PATCH) * (W // PATCH), C * PATCH * PATCH)


def forward(prep, pixel_values, input_ids, attention_mask, labels):
    Wk, aux = prep["kernel"], prep["aux"]

    # --- vision input: patches + cls-indicator column ---
    patches = _extract_patches(pixel_values)                               # [B, NP, 192]
    ext = jnp.zeros((B, SV, FEAT_DIM + 1), jnp.float32)
    ext = ext.at[:, 0, FEAT_DIM].set(1.0)
    ext = ext.at[:, 1:, :FEAT_DIM].set(patches)
    patches_ext = ext.reshape(B * SV, FEAT_DIM + 1)

    # --- token embeddings + positions scattered into the full LM sequence ---
    tok = jnp.take(aux["tok_emb"], input_ids, axis=0)                      # [B, T, D]
    seq = jnp.zeros((B, S_LM, D_LM), jnp.float32).at[:, N_QUERY:, :].set(tok)
    seq = seq + aux["lm_pos"]
    tok_pos2d = seq.reshape(B * S_LM, D_LM)

    # --- LM additive mask: batch block-diagonal AND causal AND key-padding ---
    full_key = jnp.concatenate(
        [jnp.ones((B, N_QUERY), jnp.float32), attention_mask.astype(jnp.float32)], axis=1)
    r = jnp.arange(B * S_LM)
    same_batch = (r[:, None] // S_LM) == (r[None, :] // S_LM)
    causal = (r[:, None] % S_LM) >= (r[None, :] % S_LM)
    key_ok = full_key.reshape(B * S_LM)[None, :] > 0.5
    mask_lm = jnp.where(same_batch & causal & key_ok, 0.0, NEG_INF).astype(jnp.float32)

    # --- shifted-CE targets as one-hots scattered into the logits row space ---
    shift_labels = labels[:, 1:]                                           # [B, T-1]
    valid = (shift_labels != -100)
    safe = jnp.where(valid, shift_labels, 0)
    onehot = jax.nn.one_hot(safe, VOCAB, dtype=jnp.float32) * valid[..., None].astype(jnp.float32)
    tgt = jnp.zeros((B, S_LM, VOCAB), jnp.float32)
    tgt = tgt.at[:, N_QUERY:N_QUERY + SEQ_T - 1, :].set(onehot)
    loss_tgt = tgt.reshape(B * S_LM, VOCAB)
    inv_cnt = (1.0 / jnp.maximum(jnp.sum(valid.astype(jnp.float32)), 1.0)).reshape(1, 1)

    data = {
        "patches_ext": patches_ext,
        "tok_pos2d": tok_pos2d,
        "mask_lm": mask_lm,
        "loss_tgt": loss_tgt,
        "loss_inv_cnt": inv_cnt,
    }

    logits2d, loss11 = _fused_call(Wk, data)
    logits = logits2d.reshape(B, S_LM, VOCAB)
    loss = loss11.reshape(())
    # TODO(synk): HF beam-search generate() path has no Pallas equivalent; only the
    # forward(loss, logits) semantics are reproduced here.
    return {"loss": loss, "logits": logits}


# ----------------------------------------------------------------------------
# Main
# ----------------------------------------------------------------------------
if __name__ == "__main__":
    key = jax.random.PRNGKey(0)
    k_param, k_px, k_ids = jax.random.split(key, 3)

    raw_params = init_params(k_param)
    prep = prepare_inference_weights(raw_params)      # LoRA fold + QKV fusion + constants

    pixel_values = jax.random.normal(k_px, (B, IMG_C, IMG_H, IMG_W), jnp.float32)
    input_ids = jax.random.randint(k_ids, (B, SEQ_T), 0, VOCAB, dtype=jnp.int32)
    attention_mask = jnp.array(
        [[1] * SEQ_T, [1] * (SEQ_T - 2) + [0, 0]], dtype=jnp.int32)        # sample 1 padded
    labels = jnp.where(attention_mask == 1, input_ids, -100)

    fwd = jax.jit(forward)
    out = fwd(prep, pixel_values, input_ids, attention_mask, labels)
    jax.block_until_ready(out)

    assert out["logits"].shape == (B, S_LM, VOCAB)
    assert out["loss"].shape == ()
    assert bool(jnp.isfinite(out["loss"]))
    print("KERNEL_OK")
</pallas_src>

<mosaic_0001>
module attributes {stable_mosaic.version = 11 : i64} {
  func.func @_fold_lora_kernel(%arg0: memref<32x32xf32, #tpu.memory_space<vmem>>, %arg1: memref<32x16xf32, #tpu.memory_space<vmem>>, %arg2: memref<16x32xf32, #tpu.memory_space<vmem>>, %arg3: memref<32x32xf32, #tpu.memory_space<vmem>>) attributes {dimension_semantics = [], scalar_prefetch = 0 : i64, scratch_operands = 0 : i64, tpu.core_type = #tpu.core_type<tc>} {
    %c0 = arith.constant 0 : index
    %c0_0 = arith.constant 0 : index
    %0 = vector.load %arg0[%c0, %c0_0] : memref<32x32xf32, #tpu.memory_space<vmem>>, vector<32x32xf32>
    %c0_1 = arith.constant 0 : index
    %c0_2 = arith.constant 0 : index
    %1 = vector.load %arg1[%c0_1, %c0_2] : memref<32x16xf32, #tpu.memory_space<vmem>>, vector<32x16xf32>
    %c0_3 = arith.constant 0 : index
    %c0_4 = arith.constant 0 : index
    %2 = vector.load %arg2[%c0_3, %c0_4] : memref<16x32xf32, #tpu.memory_space<vmem>>, vector<16x32xf32>
    %cst = arith.constant dense<0.000000e+00> : vector<32x32xf32>
    %3 = tpu.matmul %1, %2, %cst {dimension_numbers = #tpu.dot_dimension_numbers<[1], [0], [0], [1], [0, 0, 1, 1], [], []>} : vector<32x16xf32>, vector<16x32xf32>, vector<32x32xf32> -> vector<32x32xf32>
    %cst_5 = arith.constant 2.000000e+00 : f32
    %4 = vector.broadcast %cst_5 : f32 to vector<32x32xf32>
    %5 = arith.mulf %4, %3 : vector<32x32xf32>
    %6 = arith.addf %0, %5 : vector<32x32xf32>
    %c0_6 = arith.constant 0 : index
    %c0_7 = arith.constant 0 : index
    %7 = vector.load %arg3[%c0_6, %c0_7] : memref<32x32xf32, #tpu.memory_space<vmem>>, vector<32x32xf32>
    tpu.vector_store %arg3[%c0_6, %c0_7], %6 {strides = array<i32>} : memref<32x32xf32, #tpu.memory_space<vmem>>, vector<32x32xf32>,
    return
  }
}

</mosaic_0001>

<llo_original>
// kernel: tpu_custom_call.1
$region0: #{tpu_custom_call.1}
  #allocation0 [shape = 'u32[]', space=smem, size = 0x4, offset = 0x4, fixed_abs, tag = 'smem constant byte address 0x4 - core index']
  #allocation1 [shape = 'u32[144,128]{1,0:T(1,128)}', space=vmem, size = 0x12000, scoped, tag = 'internal scratch']
  %s0 = inlined_call_operand.vmem [shape: f32[32,32], index: 0, kind: input, shape index: {}]
  %s1 = inlined_call_operand.vmem [shape: f32[32,16], index: 1, kind: input, shape index: {}]
  %s2 = inlined_call_operand.vmem [shape: f32[16,32], index: 2, kind: input, shape index: {}]
  %s3 = inlined_call_operand.hbm [shape: f32[32,32], index: 3, kind: output, shape index: {}]
  %s4 = sld [smem:[#allocation0]]
  $region22: #{tpu_custom_call.1} parent=0
    _
  %s6 = ssub.s32 1, %s4
  %s7 = scalar_select 0, %s6, %s4
  $region1: #{tpu_custom_call.1} parent=0
    #allocation2 [shape = 'u8[16384]{0}', space=vmem, size = 0x4000, scoped, tag = 'output window, operand 0, single buffered']
    #allocation3 [shape = 's32[1]{0}', space=sflag, size = 0x4, scoped, tag = 'scoped memory for tpu_custom_call.1']
    %8 = vsyncpa [#allocation3], 0
    // Predicated region
    $region2: #{tpu_custom_call.1} parent=1 // pred_check
      _
    $region3: #{tpu_custom_call.1} parent=1 // pred_check_branch
      %10 = sbr.rel (0) target = $region5
    $region4: #{tpu_custom_call.1} parent=1 // pred_region
      _
    $region5: #{tpu_custom_call.1} parent=1 // pred_fallthru
      _
    // Predicated region
    $region6: #{tpu_custom_call.1} parent=1 // pred_check
      _
    $region7: #{tpu_custom_call.1} parent=1 // pred_check_branch
      %12 = sbr.rel (0) target = $region9
    $region8: #{tpu_custom_call.1} parent=1 // pred_region
      _
    $region9: #{tpu_custom_call.1} parent=1 // pred_fallthru
      _
    // Predicated region
    $region10: #{tpu_custom_call.1} parent=1 // pred_check
      _
    $region11: #{tpu_custom_call.1} parent=1 // pred_check_branch
      %14 = sbr.rel (0) target = $region13
    $region12: #{tpu_custom_call.1} parent=1 // pred_region
      _
    $region13: #{tpu_custom_call.1} parent=1 // pred_fallthru
      _
    %v15 = vld [vmem:[%s0] sm:$0xff]
    %v16 = vld [vmem:[%s0 + $0x8] sm:$0xff]
    %v17 = vld [vmem:[%s0 + $0x10] sm:$0xff]
    %v18 = vld [vmem:[%s0 + $0x18] sm:$0xff]
    %v19 = vld [vmem:[%s1] sm:$0xff]
    %v20 = vld [vmem:[%s1 + $0x8] sm:$0xff]
    %v21 = vld [vmem:[%s1 + $0x10] sm:$0xff]
    %v22 = vld [vmem:[%s1 + $0x18] sm:$0xff]
    %v23 = vld [vmem:[%s2] sm:$0xff]
    %v24 = vld [vmem:[%s2 + $0x8] sm:$0xff]
    %vm25 = vcmask 130048
    %v27 = vsel %vm25, %v19, 0
    %v30 = vsel %vm25, %v20, 0
    %v33 = vsel %vm25, %v21, 0
    %v36 = vsel %vm25, %v22, 0
    %38 = vmatprep.subr.mxu0 0.0
    %39 = vmatpush1.msra.mxu0 0.0
    %40 = vmatprep.subr.mxu0 0.0
    %41 = vmatpush1.msra.mxu0 0.0
    %42 = vmatprep.subr.mxu0 0.0
    %43 = vmatpush1.msra.mxu0 0.0
    %44 = vmatprep.subr.mxu0 0.0
    %45 = vmatpush1.msra.mxu0 0.0
    %46 = vmatprep.subr.mxu0 0.0
    %47 = vmatpush1.msra.mxu0 0.0
    %48 = vmatprep.subr.mxu0 0.0
    %49 = vmatpush1.msra.mxu0 0.0
    %50 = vmatprep.subr.mxu0 0.0
    %51 = vmatpush1.msra.mxu0 0.0
    %52 = vmatprep.subr.mxu0 0.0
    %53 = vmatpush1.msra.mxu0 0.0
    %54 = vmatprep.subr.mxu0 0.0
    %55 = vmatpush1.msra.mxu0 0.0
    %56 = vmatprep.subr.mxu0 0.0
    %57 = vmatpush1.msra.mxu0 0.0
    %58 = vmatprep.subr.mxu0 0.0
    %59 = vmatpush1.msra.mxu0 0.0
    %60 = vmatprep.subr.mxu0 0.0
    %61 = vmatpush1.msra.mxu0 0.0
    %62 = vmatprep.subr.mxu0 0.0
    %63 = vmatpush1.msra.mxu0 0.0
    %64 = vmatprep.subr.mxu0 0.0
    %65 = vmatpush1.msra.mxu0 0.0
    %66 = vmatprep.subr.mxu0 0.0
    %67 = vmatpush1.msra.mxu0 %v24
    %68 = vmatprep.subr.mxu0 0.0
    %69 = vmatpush1.msra.mxu0 %v23
    %70 = vmatprep.subr.mxu0 0.0
    %71 = vmatpush2.msra.mxu0 0.0
    %72 = vmatprep.subr.mxu0 0.0
    %73 = vmatpush2.msra.mxu0 0.0
    %74 = vmatprep.subr.mxu0 0.0
    %75 = vmatpush2.msra.mxu0 0.0
    %76 = vmatprep.subr.mxu0 0.0
    %77 = vmatpush2.msra.mxu0 0.0
    %78 = vmatprep.subr.mxu0 0.0
    %79 = vmatpush2.msra.mxu0 0.0
    %80 = vmatprep.subr.mxu0 0.0
    %81 = vmatpush2.msra.mxu0 0.0
    %82 = vmatprep.subr.mxu0 0.0
    %83 = vmatpush2.msra.mxu0 0.0
    %84 = vmatprep.subr.mxu0 0.0
    %85 = vmatpush2.msra.mxu0 0.0
    %86 = vmatprep.subr.mxu0 0.0
    %87 = vmatpush2.msra.mxu0 0.0
    %88 = vmatprep.subr.mxu0 0.0
    %89 = vmatpush2.msra.mxu0 0.0
    %90 = vmatprep.subr.mxu0 0.0
    %91 = vmatpush2.msra.mxu0 0.0
    %92 = vmatprep.subr.mxu0 0.0
    %93 = vmatpush2.msra.mxu0 0.0
    %94 = vmatprep.subr.mxu0 0.0
    %95 = vmatpush2.msra.mxu0 0.0
    %96 = vmatprep.subr.mxu0 0.0
    %97 = vmatpush2.msra.mxu0 0.0
    %98 = vmatprep.subr.mxu0 0.0
    %99 = vmatpush2.msra.mxu0 0.0
    %100 = vmatprep.subr.mxu0 0.0
    %101 = vmatpush2.msra.mxu0 0.0
    %102 = vmatprep.mubr.f32.mxu0 0.0
    %103 = vmatmul.mubr.f32.gmra.mxu0 %v27
    %v104 = vpop.f32.mrf.mxu0
    %v105 = vadd.f32 0.0, %v104
    %v106 = vpop.f32.mrf.mxu0
    %107 = vmatprep.mubr.f32.mxu0 0.0
    %108 = vmatmul.mubr.f32.gmra.mxu0 %v30
    %v109 = vpop.f32.mrf.mxu0
    %v110 = vadd.f32 0.0, %v109
    %v111 = vpop.f32.mrf.mxu0
    %112 = vmatprep.mubr.f32.mxu0 0.0
    %113 = vmatmul.mubr.f32.gmra.mxu0 %v33
    %v114 = vpop.f32.mrf.mxu0
    %v115 = vadd.f32 0.0, %v114
    %v116 = vpop.f32.mrf.mxu0
    %117 = vmatprep.mubr.f32.mxu0 0.0
    %118 = vmatmul.mubr.f32.gmra.mxu0 %v36
    %v119 = vpop.f32.mrf.mxu0
    %v120 = vadd.f32 0.0, %v119
    %v121 = vpop.f32.mrf.mxu0
    %122 = vdwg.mxu0
    %v123 = vmul.f32 %v105, 2.0
    %v124 = vmul.f32 %v110, 2.0
    %v125 = vmul.f32 %v115, 2.0
    %v126 = vmul.f32 %v120, 2.0
    %v127 = vadd.f32 %v15, %v123
    %v128 = vadd.f32 %v16, %v124
    %v129 = vadd.f32 %v17, %v125
    %v130 = vadd.f32 %v18, %v126
    %vm131 = vcmask 261120
    %132 = vst.msk [vmem:[#allocation2] sm:$0xff] %vm131, %v127
    %133 = vst.msk [vmem:[#allocation2 + $0x8] sm:$0xff] %vm131, %v128
    %134 = vst.msk [vmem:[#allocation2 + $0x10] sm:$0xff] %vm131, %v129
    %135 = vst.msk [vmem:[#allocation2 + $0x18] sm:$0xff] %vm131, %v130
    // Predicated region
    $region14: #{tpu_custom_call.1} parent=1 // pred_check
      _
    $region15: #{tpu_custom_call.1} parent=1 // pred_check_branch
      %137 = sbr.rel (0) target = $region17
    $region16: #{tpu_custom_call.1} parent=1 // pred_region
      %s139 = ssub.s32 512, 512
      %140 = vsyncadd [#allocation3], %s139
      %s141 = sshll.u32 [#allocation2], 4
      %s142 = int_to_ptr.vmem [resolvable:$true] %s141
      %147 = dma.vmem_to_hbm [thread:$0]  %s142, 512, %s3, [#allocation3], 128, 128, 8
    $region17: #{tpu_custom_call.1} parent=1 // pred_fallthru
      _
    // Predicated region
    $region18: #{tpu_custom_call.1} parent=1 // pred_check
      _
    $region19: #{tpu_custom_call.1} parent=1 // pred_check_branch
      %149 = sbr.rel (0) target = $region21
    $region20: #{tpu_custom_call.1} parent=1 // pred_region
      %150 = dma.done [#allocation3], 512
    $region21: #{tpu_custom_call.1} parent=1 // pred_fallthru
      _
    %151 = vsyncpa [#allocation3], 1

</llo_original>
